<compile_context>
chip_gen: v7x
topology: tpu7x:2x2x1
jax: 0.10.0
libtpu: 0.0.40
codegen_flags: <defaults>
</compile_context>

<pallas_src>
import functools

import jax
import jax.numpy as jnp
from jax import lax
from jax.experimental import pallas as pl
from jax.experimental.pallas import tpu as pltpu


def _round_up(v, m):
    return ((v + m - 1) // m) * m


_VMEM_SOFT_CAP = 44 << 20          # keep headroom on v7x (64 MiB physical / TC)
_VMEM_LIMIT_CAP = 48 << 20
_RESIDENT_WEIGHT_BYTES = 4 << 20   # hidden dims up to ~1024x1024 f32 fit


# ---------------------------------------------------------------------------
# Kernels
# ---------------------------------------------------------------------------

def _sine_resident_kernel(x_ref, w_ref, b_ref, o_ref, *, omega_0):
    """Weight-resident path: whole (N, K) weight lives in VMEM (DMA'd once).
    One MXU dot per M-tile; omega_0 * (.) + bias and sin fused as epilogue."""
    z = lax.dot_general(
        x_ref[...], w_ref[...],
        dimension_numbers=(((1,), (1,)), ((), ())),      # contract K of x with K of W
        preferred_element_type=jnp.float32,
    )
    z = z + b_ref[...]                                    # (bm, N) + (1, N), f32
    o_ref[...] = jnp.sin(omega_0 * z).astype(o_ref.dtype)


def _sine_tiled_kernel(x_ref, w_ref, b_ref, o_ref, *scratch, omega_0):
    """K-streamed path for weights too large to keep resident.  Accumulates in
    f32; when the output dtype is f32 the accumulator IS o_ref (no scratch)."""
    k = pl.program_id(2)
    acc_ref = scratch[0] if scratch else o_ref

    part = lax.dot_general(
        x_ref[...], w_ref[...],
        dimension_numbers=(((1,), (1,)), ((), ())),
        preferred_element_type=jnp.float32,
    )

    @pl.when(k == 0)
    def _():
        acc_ref[...] = part

    @pl.when(k != 0)
    def _():
        acc_ref[...] += part

    @pl.when(k == pl.num_programs(2) - 1)
    def _():
        z = acc_ref[...] + b_ref[...]
        o_ref[...] = jnp.sin(omega_0 * z).astype(o_ref.dtype)


# ---------------------------------------------------------------------------
# Wrapper
# ---------------------------------------------------------------------------

def sine_layer(x, weight, bias=None, omega_0=30.0, *,
               tm=1024, tn=1024, tk=1024, force_tiled=False):
    """SineLayer forward: sin(omega_0 * (x @ weight.T + bias)).

    x:      (M, K)   input
    weight: (N, K)   nn.Linear weight layout (out_features, in_features)
    bias:   (N,) or None
    """
    M, K = x.shape
    N, K2 = weight.shape
    assert K2 == K, (weight.shape, x.shape)

    out_dtype = x.dtype
    x_item = jnp.dtype(x.dtype).itemsize
    w_item = jnp.dtype(weight.dtype).itemsize
    o_item = jnp.dtype(out_dtype).itemsize

    tm = max(8, _round_up(int(tm), 8))
    tn = max(128, _round_up(int(tn), 128))
    tk = max(128, _round_up(int(tk), 128))

    b_f32 = (jnp.zeros((N,), jnp.float32) if bias is None
             else bias.astype(jnp.float32))
    kernel_omega = float(omega_0)

    # ---------------- weight-resident fast path ----------------------------
    if not force_tiled and N * K * w_item <= _RESIDENT_WEIGHT_BYTES:
        def vmem_need(bm_):
            return (2 * (bm_ * K * x_item + N * K * w_item + bm_ * N * o_item)
                    + N * 4 + (1 << 20))

        bm = min(M, tm)
        while bm > 8 and vmem_need(bm) > _VMEM_SOFT_CAP:
            bm = max(8, _round_up(bm // 2, 8))        # multiple of 8 when tiling M

        Mp = M if bm == M else _round_up(M, bm)
        xp = x if Mp == M else jnp.pad(x, ((0, Mp - M), (0, 0)))

        cost = pl.CostEstimate(
            flops=2 * Mp * N * K,
            transcendentals=Mp * N,
            bytes_accessed=(Mp * K * x_item + N * K * w_item
                            + N * 4 + Mp * N * o_item),
        )
        vmem_limit = min(_VMEM_LIMIT_CAP, max(32 << 20, vmem_need(bm) + (4 << 20)))

        out = pl.pallas_call(
            functools.partial(_sine_resident_kernel, omega_0=kernel_omega),
            out_shape=jax.ShapeDtypeStruct((Mp, N), out_dtype),
            grid_spec=pltpu.PrefetchScalarGridSpec(
                num_scalar_prefetch=0,
                grid=(Mp // bm,),
                in_specs=[
                    pl.BlockSpec((bm, K), lambda i: (i, 0)),   # x tile, streamed
                    pl.BlockSpec((N, K), lambda i: (0, 0)),    # whole weight, DMA'd once
                    pl.BlockSpec((1, N), lambda i: (0, 0)),    # f32 bias
                ],
                out_specs=pl.BlockSpec((bm, N), lambda i: (i, 0)),
            ),
            compiler_params=pltpu.CompilerParams(
                dimension_semantics=("parallel",),
                vmem_limit_bytes=vmem_limit,
            ),
            cost_estimate=cost,
        )(xp, weight, b_f32.reshape(1, N))
        return out if Mp == M else out[:M]

    # ---------------- K-streamed tiled path (large weights) -----------------
    bm = tm if M > tm else _round_up(M, 8)
    bn = tn if N > tn else _round_up(N, 128)
    bk = tk if K > tk else _round_up(K, 128)
    Mp, Np, Kp = _round_up(M, bm), _round_up(N, bn), _round_up(K, bk)

    xp = x if (Mp, Kp) == (M, K) else jnp.pad(x, ((0, Mp - M), (0, Kp - K)))
    wp = weight if (Np, Kp) == (N, K) else jnp.pad(weight, ((0, Np - N), (0, Kp - K)))
    bp = b_f32 if Np == N else jnp.pad(b_f32, (0, Np - N))

    grid = (Mp // bm, Np // bn, Kp // bk)
    needs_acc = out_dtype != jnp.float32
    scratch = [pltpu.VMEM((bm, bn), jnp.float32)] if needs_acc else []

    cost = pl.CostEstimate(
        flops=2 * Mp * Np * Kp,
        transcendentals=Mp * Np,
        bytes_accessed=(Mp * Kp * x_item * (Np // bn)     # x re-read per N tile
                        + Np * Kp * w_item * (Mp // bm)   # W re-read per M tile
                        + Np * 4 + Mp * Np * o_item),
    )
    vmem_need = (2 * (bm * bk * x_item + bn * bk * w_item + bm * bn * o_item)
                 + (bm * bn * 4 if needs_acc else 0) + bn * 4 + (2 << 20))
    vmem_limit = min(_VMEM_LIMIT_CAP, max(32 << 20, vmem_need))

    out = pl.pallas_call(
        functools.partial(_sine_tiled_kernel, omega_0=kernel_omega),
        out_shape=jax.ShapeDtypeStruct((Mp, Np), out_dtype),
        grid_spec=pltpu.PrefetchScalarGridSpec(
            num_scalar_prefetch=0,
            grid=grid,
            in_specs=[
                pl.BlockSpec((bm, bk), lambda i, j, k: (i, k)),   # x tile
                pl.BlockSpec((bn, bk), lambda i, j, k: (j, k)),   # W tile, (N, K) layout
                pl.BlockSpec((1, bn), lambda i, j, k: (0, j)),    # f32 bias
            ],
            out_specs=pl.BlockSpec((bm, bn), lambda i, j, k: (i, j)),
            scratch_shapes=scratch,
        ),
        compiler_params=pltpu.CompilerParams(
            dimension_semantics=("parallel", "parallel", "arbitrary"),
            vmem_limit_bytes=vmem_limit,
        ),
        cost_estimate=cost,
    )(xp, wp, bp.reshape(1, Np))
    return out if (Mp, Np) == (M, N) else out[:M, :N]


# TODO(synk): forward_with_intermediate (returning the pre-activation too) is not
# exposed; it would be a second output fed from the pre-sin f32 value.

if __name__ == "__main__":
    key = jax.random.PRNGKey(0)
    kx, kw, kb = jax.random.split(key, 3)

    # Small shapes consistent with the module: batch=16, in_features=64,
    # out_features=128 (lane-dense output). Hits the weight-resident path.
    batch, in_features, out_features = 16, 64, 128
    omega_0 = 30.0

    x = jax.random.normal(kx, (batch, in_features), dtype=jnp.float32)
    # SIREN first-layer init: W ~ U(-1/in, 1/in); bias ~ U(-1/sqrt(in), 1/sqrt(in)).
    w = jax.random.uniform(
        kw, (out_features, in_features), jnp.float32,
        minval=-1.0 / in_features, maxval=1.0 / in_features)
    b = jax.random.uniform(
        kb, (out_features,), jnp.float32,
        minval=-1.0 / (in_features ** 0.5), maxval=1.0 / (in_features ** 0.5))

    out = jax.block_until_ready(sine_layer(x, w, b, omega_0))
    ref = jnp.sin(omega_0 * (x @ w.T + b))
    assert out.shape == (batch, out_features) and out.dtype == x.dtype
    assert jnp.allclose(out, ref, atol=1e-4, rtol=1e-4), float(jnp.max(jnp.abs(out - ref)))

    # Also exercise the K-streamed tiled path (forced, small tiles -> grid (1,3,2)).
    M2, K2, N2 = 64, 256, 384
    k1, k2, k3 = jax.random.split(jax.random.PRNGKey(1), 3)
    x2 = jax.random.normal(k1, (M2, K2), dtype=jnp.float32)
    w2 = jax.random.normal(k2, (N2, K2), dtype=jnp.float32) * 0.05
    b2 = jax.random.normal(k3, (N2,), dtype=jnp.float32) * 0.05
    out2 = jax.block_until_ready(
        sine_layer(x2, w2, b2, omega_0, tn=128, tk=128, force_tiled=True))
    ref2 = jnp.sin(omega_0 * (x2 @ w2.T + b2))
    assert out2.shape == (M2, N2)
    assert jnp.allclose(out2, ref2, atol=1e-3, rtol=1e-3), float(jnp.max(jnp.abs(out2 - ref2)))

    print("KERNEL_OK")
</pallas_src>

<mosaic_0001>
module attributes {stable_mosaic.version = 11 : i64} {
  func.func @_sine_resident_kernel(%arg0: i32, %arg1: memref<16x64xf32, #tpu.memory_space<vmem>>, %arg2: memref<128x64xf32, #tpu.memory_space<vmem>>, %arg3: memref<1x128xf32, #tpu.memory_space<vmem>>, %arg4: memref<16x128xf32, #tpu.memory_space<vmem>>) attributes {dimension_semantics = [#tpu.dimension_semantics<parallel>], iteration_bounds = array<i64: 1>, scalar_prefetch = 0 : i64, scratch_operands = 0 : i64, tpu.core_type = #tpu.core_type<tc>, window_params = [{transform_indices = @transform_0, window_bounds = array<i64: 16, 64>}, {pipeline_mode = #tpu.pipeline_mode<synchronous>, transform_indices = @transform_1, window_bounds = array<i64: 128, 64>}, {pipeline_mode = #tpu.pipeline_mode<synchronous>, transform_indices = @transform_2, window_bounds = array<i64: 1, 128>}, {transform_indices = @transform_3, window_bounds = array<i64: 16, 128>}]} {
    %c0 = arith.constant 0 : index
    %c0_0 = arith.constant 0 : index
    %0 = vector.load %arg1[%c0, %c0_0] : memref<16x64xf32, #tpu.memory_space<vmem>>, vector<16x64xf32>
    %c0_1 = arith.constant 0 : index
    %c0_2 = arith.constant 0 : index
    %1 = vector.load %arg2[%c0_1, %c0_2] : memref<128x64xf32, #tpu.memory_space<vmem>>, vector<128x64xf32>
    %cst = arith.constant dense<0.000000e+00> : vector<16x128xf32>
    %2 = tpu.matmul %0, %1, %cst {dimension_numbers = #tpu.dot_dimension_numbers<[1], [1], [0], [0], [0, 0, 1, 0], [], []>} : vector<16x64xf32>, vector<128x64xf32>, vector<16x128xf32> -> vector<16x128xf32>
    %c0_3 = arith.constant 0 : index
    %c0_4 = arith.constant 0 : index
    %3 = vector.load %arg3[%c0_3, %c0_4] : memref<1x128xf32, #tpu.memory_space<vmem>>, vector<1x128xf32>
    %4 = vector.broadcast %3 : vector<1x128xf32> to vector<16x128xf32>
    %5 = arith.addf %2, %4 : vector<16x128xf32>
    %cst_5 = arith.constant 3.000000e+01 : f32
    %6 = vector.broadcast %cst_5 : f32 to vector<16x128xf32>
    %7 = arith.mulf %6, %5 : vector<16x128xf32>
    %8 = math.sin %7 : vector<16x128xf32>
    %c0_6 = arith.constant 0 : index
    %c0_7 = arith.constant 0 : index
    %9 = vector.load %arg4[%c0_6, %c0_7] : memref<16x128xf32, #tpu.memory_space<vmem>>, vector<16x128xf32>
    tpu.vector_store %arg4[%c0_6, %c0_7], %8 {strides = array<i32>} : memref<16x128xf32, #tpu.memory_space<vmem>>, vector<16x128xf32>,
    return
  }
  func.func @transform_0(%arg0: i32) -> (i32, i32) {
    %c0_i32 = arith.constant 0 : i32
    %c0_i32_0 = arith.constant 0 : i32
    return %arg0, %c0_i32 : i32, i32
  }
  func.func @transform_1(%arg0: i32) -> (i32, i32) {
    %c0_i32 = arith.constant 0 : i32
    %c0_i32_0 = arith.constant 0 : i32
    %c0_i32_1 = arith.constant 0 : i32
    return %c0_i32, %c0_i32_0 : i32, i32
  }
  func.func @transform_2(%arg0: i32) -> (i32, i32) {
    %c0_i32 = arith.constant 0 : i32
    %c0_i32_0 = arith.constant 0 : i32
    %c0_i32_1 = arith.constant 0 : i32
    return %c0_i32, %c0_i32_0 : i32, i32
  }
  func.func @transform_3(%arg0: i32) -> (i32, i32) {
    %c0_i32 = arith.constant 0 : i32
    %c0_i32_0 = arith.constant 0 : i32
    return %arg0, %c0_i32 : i32, i32
  }
}

</mosaic_0001>

<llo_original>
// kernel: tpu_custom_call.1
$region0: #{tpu_custom_call.1}
  #allocation0 [shape = 'u32[]', space=smem, size = 0x4, offset = 0x4, fixed_abs, tag = 'smem constant byte address 0x4 - core index']
  #allocation1 [shape = 'u32[144,128]{1,0:T(1,128)}', space=vmem, size = 0x12000, scoped, tag = 'internal scratch']
  %s0 = inlined_call_operand.vmem [shape: f32[16,64], index: 0, kind: input, shape index: {}]
  %s1 = inlined_call_operand.vmem [shape: f32[128,64], index: 1, kind: input, shape index: {}]
  %s2 = inlined_call_operand.vmem [shape: f32[1,128], index: 2, kind: input, shape index: {}]
  %s3 = inlined_call_operand.hbm [shape: f32[16,128], index: 3, kind: output, shape index: {}]
  %s4 = sld [smem:[#allocation0]]
  $region22: #{tpu_custom_call.1} parent=0
    _
  %s6 = ssub.s32 1, %s4
  %s7 = scalar_select 0, %s6, %s4
  $region1: #{tpu_custom_call.1} parent=0
    #allocation2 [shape = 'u8[8192]{0}', space=vmem, size = 0x2000, scoped, tag = 'output window, operand 0, single buffered']
    #allocation3 [shape = 's32[1]{0}', space=sflag, size = 0x4, scoped, tag = 'scoped memory for tpu_custom_call.1']
    %8 = vsyncpa [#allocation3], 0
    // Predicated region
    $region2: #{tpu_custom_call.1} parent=1 // pred_check
      _
    $region3: #{tpu_custom_call.1} parent=1 // pred_check_branch
      %10 = sbr.rel (0) target = $region5
    $region4: #{tpu_custom_call.1} parent=1 // pred_region
      _
    $region5: #{tpu_custom_call.1} parent=1 // pred_fallthru
      _
    // Predicated region
    $region6: #{tpu_custom_call.1} parent=1 // pred_check
      _
    $region7: #{tpu_custom_call.1} parent=1 // pred_check_branch
      %12 = sbr.rel (0) target = $region9
    $region8: #{tpu_custom_call.1} parent=1 // pred_region
      _
    $region9: #{tpu_custom_call.1} parent=1 // pred_fallthru
      _
    // Predicated region
    $region10: #{tpu_custom_call.1} parent=1 // pred_check
      _
    $region11: #{tpu_custom_call.1} parent=1 // pred_check_branch
      %14 = sbr.rel (0) target = $region13
    $region12: #{tpu_custom_call.1} parent=1 // pred_region
      _
    $region13: #{tpu_custom_call.1} parent=1 // pred_fallthru
      _
    %v15 = vld [vmem:[%s0] sm:$0xff]
    %v16 = vld [vmem:[%s0 + $0x8] sm:$0xff]
    %v17 = vld [vmem:[%s1] sm:$0xff]
    %v18 = vld [vmem:[%s1 + $0x8] sm:$0xff]
    %v19 = vld [vmem:[%s1 + $0x10] sm:$0xff]
    %v20 = vld [vmem:[%s1 + $0x18] sm:$0xff]
    %v21 = vld [vmem:[%s1 + $0x20] sm:$0xff]
    %v22 = vld [vmem:[%s1 + $0x28] sm:$0xff]
    %v23 = vld [vmem:[%s1 + $0x30] sm:$0xff]
    %v24 = vld [vmem:[%s1 + $0x38] sm:$0xff]
    %v25 = vld [vmem:[%s1 + $0x40] sm:$0xff]
    %v26 = vld [vmem:[%s1 + $0x48] sm:$0xff]
    %v27 = vld [vmem:[%s1 + $0x50] sm:$0xff]
    %v28 = vld [vmem:[%s1 + $0x58] sm:$0xff]
    %v29 = vld [vmem:[%s1 + $0x60] sm:$0xff]
    %v30 = vld [vmem:[%s1 + $0x68] sm:$0xff]
    %v31 = vld [vmem:[%s1 + $0x70] sm:$0xff]
    %v32 = vld [vmem:[%s1 + $0x78] sm:$0xff]
    %v33 = vld [vmem:[%s2] sm:$0x1]
    %v35 = vlaneseq
    %v36 = vshrl.u32 %v35, 7
    %v37 = vsub.s32 0, %v36
    %v38 = vrot.slane %v33, %v37
    %vm40 = vcmask 523264
    %v42 = vsel %vm40, %v15, 0
    %v45 = vsel %vm40, %v16, 0
    %v48 = vsel %vm40, %v17, 0
    %v51 = vsel %vm40, %v18, 0
    %v54 = vsel %vm40, %v19, 0
    %v57 = vsel %vm40, %v20, 0
    %v60 = vsel %vm40, %v21, 0
    %v63 = vsel %vm40, %v22, 0
    %v66 = vsel %vm40, %v23, 0
    %v69 = vsel %vm40, %v24, 0
    %v72 = vsel %vm40, %v25, 0
    %v75 = vsel %vm40, %v26, 0
    %v78 = vsel %vm40, %v27, 0
    %v81 = vsel %vm40, %v28, 0
    %v84 = vsel %vm40, %v29, 0
    %v87 = vsel %vm40, %v30, 0
    %v90 = vsel %vm40, %v31, 0
    %v93 = vsel %vm40, %v32, 0
    %95 = vmatprep.subr.mxu0 0.0
    %96 = vmatpush1.xpose.msra.mxu0 %v48
    %97 = vmatprep.subr.mxu0 0.0
    %98 = vmatpush1.xpose.msra.mxu0 %v51
    %99 = vmatprep.subr.mxu0 0.0
    %100 = vmatpush1.xpose.msra.mxu0 %v54
    %101 = vmatprep.subr.mxu0 0.0
    %102 = vmatpush1.xpose.msra.mxu0 %v57
    %103 = vmatprep.subr.mxu0 0.0
    %104 = vmatpush1.xpose.msra.mxu0 %v60
    %105 = vmatprep.subr.mxu0 0.0
    %106 = vmatpush1.xpose.msra.mxu0 %v63
    %107 = vmatprep.subr.mxu0 0.0
    %108 = vmatpush1.xpose.msra.mxu0 %v66
    %109 = vmatprep.subr.mxu0 0.0
    %110 = vmatpush1.xpose.msra.mxu0 %v69
    %111 = vmatprep.subr.mxu0 0.0
    %112 = vmatpush1.xpose.msra.mxu0 %v72
    %113 = vmatprep.subr.mxu0 0.0
    %114 = vmatpush1.xpose.msra.mxu0 %v75
    %115 = vmatprep.subr.mxu0 0.0
    %116 = vmatpush1.xpose.msra.mxu0 %v78
    %117 = vmatprep.subr.mxu0 0.0
    %118 = vmatpush1.xpose.msra.mxu0 %v81
    %119 = vmatprep.subr.mxu0 0.0
    %120 = vmatpush1.xpose.msra.mxu0 %v84
    %121 = vmatprep.subr.mxu0 0.0
    %122 = vmatpush1.xpose.msra.mxu0 %v87
    %123 = vmatprep.subr.mxu0 0.0
    %124 = vmatpush1.xpose.msra.mxu0 %v90
    %125 = vmatprep.subr.mxu0 0.0
    %126 = vmatpush1.xpose.msra.mxu0 %v93
    %127 = vmatprep.subr.mxu0 0.0
    %128 = vmatpush1.xpose.msra.mxu0 0.0
    %129 = vmatprep.subr.mxu0 0.0
    %130 = vmatpush1.xpose.msra.mxu0 0.0
    %131 = vmatprep.subr.mxu0 0.0
    %132 = vmatpush1.xpose.msra.mxu0 0.0
    %133 = vmatprep.subr.mxu0 0.0
    %134 = vmatpush1.xpose.msra.mxu0 0.0
    %135 = vmatprep.subr.mxu0 0.0
    %136 = vmatpush1.xpose.msra.mxu0 0.0
    %137 = vmatprep.subr.mxu0 0.0
    %138 = vmatpush1.xpose.msra.mxu0 0.0
    %139 = vmatprep.subr.mxu0 0.0
    %140 = vmatpush1.xpose.msra.mxu0 0.0
    %141 = vmatprep.subr.mxu0 0.0
    %142 = vmatpush1.xpose.msra.mxu0 0.0
    %143 = vmatprep.subr.mxu0 0.0
    %144 = vmatpush1.xpose.msra.mxu0 0.0
    %145 = vmatprep.subr.mxu0 0.0
    %146 = vmatpush1.xpose.msra.mxu0 0.0
    %147 = vmatprep.subr.mxu0 0.0
    %148 = vmatpush1.xpose.msra.mxu0 0.0
    %149 = vmatprep.subr.mxu0 0.0
    %150 = vmatpush1.xpose.msra.mxu0 0.0
    %151 = vmatprep.subr.mxu0 0.0
    %152 = vmatpush1.xpose.msra.mxu0 0.0
    %153 = vmatprep.subr.mxu0 0.0
    %154 = vmatpush1.xpose.msra.mxu0 0.0
    %155 = vmatprep.subr.mxu0 0.0
    %156 = vmatpush1.xpose.msra.mxu0 0.0
    %157 = vmatprep.subr.mxu0 0.0
    %158 = vmatpush1.xpose.msra.mxu0 0.0
    %159 = vmatprep.mubr.f32.mxu0 0.0
    %160 = vmatmul.mubr.f32.gmra.mrb[0].mxu0 %v42
    %v161 = vpop.f32.mrb[0].mxu0
    %v162 = vadd.f32 %v38, %v161
    %v163 = vpop.f32.mrb[0].mxu0
    %164 = vmatprep.mubr.f32.mxu0 0.0
    %165 = vmatmul.mubr.f32.gmra.mrb[0].mxu0 %v45
    %v166 = vpop.f32.mrb[0].mxu0
    %v167 = vadd.f32 %v38, %v166
    %v168 = vpop.f32.mrb[0].mxu0
    %169 = vdwg.mxu0
    %v170 = vmul.f32 %v162, 30.0
    %v171 = vmul.f32 %v167, 30.0
    %v172 = vand.u32 2147483647, %v170
    %vm173 = vcmp.le.f32.partialorder %v172, 0.7853982
    %vm174 = vcmp.lt.s32.totalorder %v170, 0
    %v175 = vand.u32 %v170, 2139095040
    %v176 = vshrl.u32 %v175, 23
    %v177 = vsub.s32 %v176, 127
    %v178 = vand.u32 2147483647, %v170
    %v179 = vand.u32 %v178, 8388607
    %v180 = vor.u32 %v179, 8388608
    %v181 = vsub.s32 0, %v180
    %v182 = vadd.s32 %v177, 1
    %vm183 = vcmp.gt.s32.totalorder %v182, 0
    %v184 = vsel %vm183, %v182, 0
    %v185 = vshrl.u32 %v184, 5
    %v186 = vand.u32 %v184, 31
    %v187 = vsub.s32 32, %v186
    %v188 = vshrl.u32 683565275, %v187
    %v189 = vshll.u32 683565275, %v186
    %v190 = vshrl.u32 2475754826, %v187
    %v191 = vor.u32 %v189, %v190
    %v192 = vshll.u32 2475754826, %v186
    %v193 = vshrl.u32 2131351028, %v187
    %v194 = vor.u32 %v192, %v193
    %v195 = vshll.u32 2131351028, %v186
    %v196 = vshrl.u32 2102212464, %v187
    %v197 = vor.u32 %v195, %v196
    %v198 = vshll.u32 2102212464, %v186
    %v199 = vshrl.u32 920167782, %v187
    %v200 = vor.u32 %v198, %v199
    %v201 = vshll.u32 920167782, %v186
    %v202 = vshrl.u32 1326507024, %v187
    %v203 = vor.u32 %v201, %v202
    %vm204 = vcmp.lt.s32.totalorder %v185, 1
    %vm205 = vcmp.lt.s32.totalorder %v185, 2
    %vm206 = vcmp.lt.s32.totalorder %v185, 3
    %vm207 = vcmp.lt.s32.totalorder %v185, 4
    %v208 = vsel %vm204, %v188, %v191
    %v209 = vsel %vm207, %v197, 2102212464
    %v210 = vsel %vm206, %v194, %v209
    %v211 = vsel %vm205, %v208, %v210
    %v212 = vsel %vm204, %v191, %v194
    %v213 = vsel %vm207, %v200, 920167782
    %v214 = vsel %vm206, %v197, %v213
    %v215 = vsel %vm205, %v212, %v214
    %v216 = vsel %vm204, %v194, %v197
    %v217 = vsel %vm207, %v203, 1326507024
    %v218 = vsel %vm206, %v200, %v217
    %v219 = vsel %vm205, %v216, %v218
    %v220 = vshll.u32 %v180, 8
    %v221 = vmul.u32.u64.compose %v220, %v219
    %v222 = vextract.low.u32 %v221
    %v223 = vextract.high.u32 %v221
    %v224 = vmul.u32.u64.compose %v220, %v215
    %v225 = vextract.low.u32 %v224
    %v226 = vextract.high.u32 %v224
    %v227 = vmul.u32 %v220, %v211
    %v228 = vadd.s32 %v223, %v225
    %vm229 = vc.u32 %v223, %v225
    %v230 = vadd.s32 %v226, 1
    %v231 = vsel %vm229, %v230, %v226
    %v232 = vadd.s32 %v227, %v231
    %v233 = vadd.s32 %v232, 536870912
    %v234 = vshrl.u32 %v233, 30
    %v235 = vshll.u32 %v234, 30
    %v236 = vsub.s32 %v232, %v235
    %vm237 = vcmp.lt.s32.totalorder %v236, 0
    %v238 = vsub.s32 0, %v236
    %v239 = vsel %vm237, %v238, %v236
    %v240 = vclz %v239
    %v241 = vsub.s32 %v240, 2
    %vm242 = vcmp.gt.s32.totalorder 0, %v241
    %v243 = vsel %vm242, 0, %v241
    %v244 = vsub.s32 32, %v243
    %v245 = vshll.u32 %v236, %v243
    %v246 = vshrl.u32 %v228, %v244
    %v247 = vor.u32 %v245, %v246
    %v248 = vsub.s32 4294967266, %v243
    %v249 = vadd.s32 %v248, 127
    %v250 = vshll.u32 %v249, 23
    %v251 = vor.u32 4788187, %v250
    %v252 = vand.u32 2147483647, %v251
    %v254 = vcvt.s32.f32 %v247
    %v255 = vmul.f32 %v254, %v252
    %v256 = vxor.u32 %v255, 2147483648
    %v257 = vsel %vm174, %v256, %v255
    %v258 = vsub.s32 4, %v234
    %v259 = vsel %vm174, %v258, %v234
    %v260 = vsel %vm173, %v170, %v257
    %v261 = vsel %vm173, 0, %v259
    %v262 = vcosq.f32.pop %v260
    %v263 = vsinq.f32.pop %v260
    %vm264 = vweird.f32 %v170
    %v265 = vadd.s32 %v261, 3
    %v266 = vand.u32 %v265, 3
    %vm267 = vcmp.lt.s32.totalorder %v266, 2
    %vm268 = vcmp.eq.s32.totalorder %v266, 0
    %v269 = vxor.u32 %v263, 2147483648
    %v270 = vsel %vm268, %v262, %v269
    %vm271 = vcmp.eq.s32.totalorder %v266, 2
    %v272 = vxor.u32 %v262, 2147483648
    %v273 = vsel %vm271, %v272, %v263
    %v274 = vsel %vm267, %v270, %v273
    %v275 = vsel %vm264, nan, %v274
    %v276 = vand.u32 2147483647, %v171
    %vm277 = vcmp.le.f32.partialorder %v276, 0.7853982
    %vm278 = vcmp.lt.s32.totalorder %v171, 0
    %v279 = vand.u32 %v171, 2139095040
    %v280 = vshrl.u32 %v279, 23
    %v281 = vsub.s32 %v280, 127
    %v282 = vand.u32 2147483647, %v171
    %v283 = vand.u32 %v282, 8388607
    %v284 = vor.u32 %v283, 8388608
    %v285 = vsub.s32 0, %v284
    %v286 = vadd.s32 %v281, 1
    %vm287 = vcmp.gt.s32.totalorder %v286, 0
    %v288 = vsel %vm287, %v286, 0
    %v289 = vshrl.u32 %v288, 5
    %v290 = vand.u32 %v288, 31
    %v291 = vsub.s32 32, %v290
    %v292 = vshrl.u32 683565275, %v291
    %v293 = vshll.u32 683565275, %v290
    %v294 = vshrl.u32 2475754826, %v291
    %v295 = vor.u32 %v293, %v294
    %v296 = vshll.u32 2475754826, %v290
    %v297 = vshrl.u32 2131351028, %v291
    %v298 = vor.u32 %v296, %v297
    %v299 = vshll.u32 2131351028, %v290
    %v300 = vshrl.u32 2102212464, %v291
    %v301 = vor.u32 %v299, %v300
    %v302 = vshll.u32 2102212464, %v290
    %v303 = vshrl.u32 920167782, %v291
    %v304 = vor.u32 %v302, %v303
    %v305 = vshll.u32 920167782, %v290
    %v306 = vshrl.u32 1326507024, %v291
    %v307 = vor.u32 %v305, %v306
    %vm308 = vcmp.lt.s32.totalorder %v289, 1
    %vm309 = vcmp.lt.s32.totalorder %v289, 2
    %vm310 = vcmp.lt.s32.totalorder %v289, 3
    %vm311 = vcmp.lt.s32.totalorder %v289, 4
    %v312 = vsel %vm308, %v292, %v295
    %v313 = vsel %vm311, %v301, 2102212464
    %v314 = vsel %vm310, %v298, %v313
    %v315 = vsel %vm309, %v312, %v314
    %v316 = vsel %vm308, %v295, %v298
    %v317 = vsel %vm311, %v304, 920167782
    %v318 = vsel %vm310, %v301, %v317
    %v319 = vsel %vm309, %v316, %v318
    %v320 = vsel %vm308, %v298, %v301
    %v321 = vsel %vm311, %v307, 1326507024
    %v322 = vsel %vm310, %v304, %v321
    %v323 = vsel %vm309, %v320, %v322
    %v324 = vshll.u32 %v284, 8
    %v325 = vmul.u32.u64.compose %v324, %v323
    %v326 = vextract.low.u32 %v325
    %v327 = vextract.high.u32 %v325
    %v328 = vmul.u32.u64.compose %v324, %v319
    %v329 = vextract.low.u32 %v328
    %v330 = vextract.high.u32 %v328
    %v331 = vmul.u32 %v324, %v315
    %v332 = vadd.s32 %v327, %v329
    %vm333 = vc.u32 %v327, %v329
    %v334 = vadd.s32 %v330, 1
    %v335 = vsel %vm333, %v334, %v330
    %v336 = vadd.s32 %v331, %v335
    %v337 = vadd.s32 %v336, 536870912
    %v338 = vshrl.u32 %v337, 30
    %v339 = vshll.u32 %v338, 30
    %v340 = vsub.s32 %v336, %v339
    %vm341 = vcmp.lt.s32.totalorder %v340, 0
    %v342 = vsub.s32 0, %v340
    %v343 = vsel %vm341, %v342, %v340
    %v344 = vclz %v343
    %v345 = vsub.s32 %v344, 2
    %vm346 = vcmp.gt.s32.totalorder 0, %v345
    %v347 = vsel %vm346, 0, %v345
    %v348 = vsub.s32 32, %v347
    %v349 = vshll.u32 %v340, %v347
    %v350 = vshrl.u32 %v332, %v348
    %v351 = vor.u32 %v349, %v350
    %v352 = vsub.s32 4294967266, %v347
    %v353 = vadd.s32 %v352, 127
    %v354 = vshll.u32 %v353, 23
    %v355 = vor.u32 4788187, %v354
    %v356 = vand.u32 2147483647, %v355
    %v358 = vcvt.s32.f32 %v351
    %v359 = vmul.f32 %v358, %v356
    %v360 = vxor.u32 %v359, 2147483648
    %v361 = vsel %vm278, %v360, %v359
    %v362 = vsub.s32 4, %v338
    %v363 = vsel %vm278, %v362, %v338
    %v364 = vsel %vm277, %v171, %v361
    %v365 = vsel %vm277, 0, %v363
    %v366 = vcosq.f32.pop %v364
    %v367 = vsinq.f32.pop %v364
    %vm368 = vweird.f32 %v171
    %v369 = vadd.s32 %v365, 3
    %v370 = vand.u32 %v369, 3
    %vm371 = vcmp.lt.s32.totalorder %v370, 2
    %vm372 = vcmp.eq.s32.totalorder %v370, 0
    %v373 = vxor.u32 %v367, 2147483648
    %v374 = vsel %vm372, %v366, %v373
    %vm375 = vcmp.eq.s32.totalorder %v370, 2
    %v376 = vxor.u32 %v366, 2147483648
    %v377 = vsel %vm375, %v376, %v367
    %v378 = vsel %vm371, %v374, %v377
    %v379 = vsel %vm368, nan, %v378
    %380 = vst [vmem:[#allocation2] sm:$0xff] %v275
    %381 = vst [vmem:[#allocation2 + $0x8] sm:$0xff] %v379
    // Predicated region
    $region14: #{tpu_custom_call.1} parent=1 // pred_check
      _
    $region15: #{tpu_custom_call.1} parent=1 // pred_check_branch
      %383 = sbr.rel (0) target = $region17
    $region16: #{tpu_custom_call.1} parent=1 // pred_region
      %s385 = ssub.s32 256, 256
      %386 = vsyncadd [#allocation3], %s385
      %s387 = sshll.u32 [#allocation2], 4
      %s388 = int_to_ptr.vmem [resolvable:$true] %s387
      %393 = dma.vmem_to_hbm [thread:$0]  %s388, 256, %s3, [#allocation3], 128, 128, 8
    $region17: #{tpu_custom_call.1} parent=1 // pred_fallthru
      _
    // Predicated region
    $region18: #{tpu_custom_call.1} parent=1 // pred_check
      _
    $region19: #{tpu_custom_call.1} parent=1 // pred_check_branch
      %395 = sbr.rel (0) target = $region21
    $region20: #{tpu_custom_call.1} parent=1 // pred_region
      %396 = dma.done [#allocation3], 256
    $region21: #{tpu_custom_call.1} parent=1 // pred_fallthru
      _
    %397 = vsyncpa [#allocation3], 1

</llo_original>
